<compile_context>
chip_gen: v6e
topology: v6e:2x2x1
jax: 0.10.0
libtpu: 0.0.40
codegen_flags: <defaults>
</compile_context>

<pallas_src>
import functools

import jax
import jax.numpy as jnp
import numpy as np
from jax.experimental import pallas as pl
from jax.experimental.pallas import tpu as pltpu


def _q_kernel(i_ref, p_ref, l_ref, o_ref, *, lamda):
    """Elementwise Q update for one (batch, H-strip) tile.

    i_ref: (1, 3, TH, W)  input image I (RGB)
    p_ref: (1, 3, TH, W)  reflectance P (RGB)
    l_ref: (1, 1, TH, W)  illumination prior L
    o_ref: (1, 1, TH, W)  output Q
    """
    ir = i_ref[0, 0].astype(jnp.float32)
    ig = i_ref[0, 1].astype(jnp.float32)
    ib = i_ref[0, 2].astype(jnp.float32)
    pr = p_ref[0, 0].astype(jnp.float32)
    pg = p_ref[0, 1].astype(jnp.float32)
    pb = p_ref[0, 2].astype(jnp.float32)
    l = l_ref[0, 0].astype(jnp.float32)

    num = ir * pr + ig * pg + ib * pb + lamda * l
    den = pr * pr + pg * pg + pb * pb + lamda
    # Exact divide: VPU/EUP have huge slack under 32 B/pixel of HBM traffic,
    # so the divide is free filler hidden behind the DMAs.
    o_ref[0, 0] = (num / den).astype(o_ref.dtype)


def _vmem_capacity_bytes():
    """Physical VMEM of the local chip; conservative fallback (v7x = 64 MiB)."""
    try:
        return int(pltpu.get_tpu_info().vmem_capacity_bytes)
    except Exception:
        return 64 << 20


def _pick_strip(N, H, W, itemsize, vmem_cap):
    """VMEM-budget-driven H-strip height (multiple of the sublane tile)."""
    sublane = 8 * (4 // itemsize)          # 8 for f32, 16 for bf16
    if H <= sublane:
        return H                            # block dim == full array dim: legal

    # 8 planes per step (3 I + 3 P + 1 L + 1 Q), double-buffered by pipeline.
    bytes_per_row = 2 * 8 * W * itemsize
    budget = min((vmem_cap * 3) // 4, 96 << 20)   # headroom; cap well below phys
    th = budget // bytes_per_row
    th = min(th, 512, H)                    # >=512 rows is past the roofline knee
    th = max(sublane, (th // sublane) * sublane)

    # v7x megacore balance: make sure both TensorCores get at least one block.
    if N * (-(-H // th)) < 2:
        half = -(-(-(-H // 2)) // sublane) * sublane   # round_up(ceil(H/2), sublane)
        th = max(sublane, min(th, half))
    return th


def q_update(I, P, L, lamda):
    """Pallas forward of module Q.

    I: (N,3,H,W)  P: (N,3,H,W)  L: (N,1,H,W)  lamda: python scalar -> (N,1,H,W)
    """
    N, C, H, W = I.shape
    assert C == 3 and P.shape == I.shape and L.shape == (N, 1, H, W)
    lamda = float(lamda)

    itemsize = jnp.dtype(I.dtype).itemsize
    vmem_cap = _vmem_capacity_bytes()
    th = _pick_strip(N, H, W, itemsize, vmem_cap)
    grid = (N, pl.cdiv(H, th))

    # Scoped-VMEM limit: double-buffered working set + ~25% headroom, kept
    # inside the chip's physical VMEM (v5e default of 16 MiB is too small for
    # big strips; v7x only has 64 MiB physical).
    wset = 2 * 8 * W * itemsize * th
    vmem_limit = int(min(max(wset + wset // 4, 32 << 20), (vmem_cap * 9) // 10))

    rgb_spec = pl.BlockSpec((1, 3, th, W), lambda n, h: (n, 0, h, 0))
    one_spec = pl.BlockSpec((1, 1, th, W), lambda n, h: (n, 0, h, 0))

    return pl.pallas_call(
        functools.partial(_q_kernel, lamda=lamda),
        out_shape=jax.ShapeDtypeStruct((N, 1, H, W), I.dtype),
        grid_spec=pltpu.PrefetchScalarGridSpec(
            num_scalar_prefetch=0,
            grid=grid,
            in_specs=[rgb_spec, rgb_spec, one_spec],   # I, P, L
            out_specs=one_spec,
        ),
        compiler_params=pltpu.CompilerParams(
            dimension_semantics=("parallel", "parallel"),
            vmem_limit_bytes=vmem_limit),
    )(I, P, L)


def q_update_ref(I, P, L, lamda):
    """Pure-JAX reference matching the PyTorch forward exactly."""
    IR, IG, IB = I[:, 0:1], I[:, 1:2], I[:, 2:3]
    PR, PG, PB = P[:, 0:1], P[:, 1:2], P[:, 2:3]
    return (IR * PR + IG * PG + IB * PB + lamda * L) / (
        PR * PR + PG * PG + PB * PB + lamda)


if __name__ == "__main__":
    key = jax.random.PRNGKey(0)
    k_i, k_p, k_l = jax.random.split(key, 3)

    N, H, W = 2, 16, 16
    # Image-like positive inputs (as in URetinexNet): P in (0,1), lamda > 0
    # keep the denominator well conditioned.
    I = jax.nn.sigmoid(jax.random.normal(k_i, (N, 3, H, W), jnp.float32))
    P = jax.nn.sigmoid(jax.random.normal(k_p, (N, 3, H, W), jnp.float32))
    L = jax.nn.sigmoid(jax.random.normal(k_l, (N, 1, H, W), jnp.float32))
    lamda = 0.5

    out = jax.block_until_ready(q_update(I, P, L, lamda))
    ref = jax.block_until_ready(q_update_ref(I, P, L, lamda))

    assert out.shape == (N, 1, H, W)
    np.testing.assert_allclose(np.asarray(out), np.asarray(ref),
                               rtol=1e-5, atol=1e-5)
    print("KERNEL_OK")
</pallas_src>

<mosaic_0001>
module attributes {stable_mosaic.version = 11 : i64} {
  func.func @_q_kernel(%arg0: i32, %arg1: i32, %arg2: memref<1x3x16x16xf32, #tpu.memory_space<vmem>>, %arg3: memref<1x3x16x16xf32, #tpu.memory_space<vmem>>, %arg4: memref<1x1x16x16xf32, #tpu.memory_space<vmem>>, %arg5: memref<1x1x16x16xf32, #tpu.memory_space<vmem>>) attributes {dimension_semantics = [#tpu.dimension_semantics<parallel>, #tpu.dimension_semantics<parallel>], iteration_bounds = array<i64: 2, 1>, scalar_prefetch = 0 : i64, scratch_operands = 0 : i64, tpu.core_type = #tpu.core_type<tc>, window_params = [{transform_indices = @transform_0, window_bounds = array<i64: 1, 3, 16, 16>}, {transform_indices = @transform_1, window_bounds = array<i64: 1, 3, 16, 16>}, {transform_indices = @transform_2, window_bounds = array<i64: 1, 1, 16, 16>}, {transform_indices = @transform_3, window_bounds = array<i64: 1, 1, 16, 16>}]} {
    %c0 = arith.constant 0 : index
    %c0_0 = arith.constant 0 : index
    %c0_1 = arith.constant 0 : index
    %c0_2 = arith.constant 0 : index
    %0 = vector.load %arg2[%c0, %c0_0, %c0_1, %c0_2] : memref<1x3x16x16xf32, #tpu.memory_space<vmem>>, vector<1x1x16x16xf32>
    %1 = vector.shape_cast %0 : vector<1x1x16x16xf32> to vector<16x16xf32>
    %c0_3 = arith.constant 0 : index
    %c1 = arith.constant 1 : index
    %c0_4 = arith.constant 0 : index
    %c0_5 = arith.constant 0 : index
    %2 = vector.load %arg2[%c0_3, %c1, %c0_4, %c0_5] : memref<1x3x16x16xf32, #tpu.memory_space<vmem>>, vector<1x1x16x16xf32>
    %3 = vector.shape_cast %2 : vector<1x1x16x16xf32> to vector<16x16xf32>
    %c0_6 = arith.constant 0 : index
    %c2 = arith.constant 2 : index
    %c0_7 = arith.constant 0 : index
    %c0_8 = arith.constant 0 : index
    %4 = vector.load %arg2[%c0_6, %c2, %c0_7, %c0_8] : memref<1x3x16x16xf32, #tpu.memory_space<vmem>>, vector<1x1x16x16xf32>
    %5 = vector.shape_cast %4 : vector<1x1x16x16xf32> to vector<16x16xf32>
    %c0_9 = arith.constant 0 : index
    %c0_10 = arith.constant 0 : index
    %c0_11 = arith.constant 0 : index
    %c0_12 = arith.constant 0 : index
    %6 = vector.load %arg3[%c0_9, %c0_10, %c0_11, %c0_12] : memref<1x3x16x16xf32, #tpu.memory_space<vmem>>, vector<1x1x16x16xf32>
    %7 = vector.shape_cast %6 : vector<1x1x16x16xf32> to vector<16x16xf32>
    %c0_13 = arith.constant 0 : index
    %c1_14 = arith.constant 1 : index
    %c0_15 = arith.constant 0 : index
    %c0_16 = arith.constant 0 : index
    %8 = vector.load %arg3[%c0_13, %c1_14, %c0_15, %c0_16] : memref<1x3x16x16xf32, #tpu.memory_space<vmem>>, vector<1x1x16x16xf32>
    %9 = vector.shape_cast %8 : vector<1x1x16x16xf32> to vector<16x16xf32>
    %c0_17 = arith.constant 0 : index
    %c2_18 = arith.constant 2 : index
    %c0_19 = arith.constant 0 : index
    %c0_20 = arith.constant 0 : index
    %10 = vector.load %arg3[%c0_17, %c2_18, %c0_19, %c0_20] : memref<1x3x16x16xf32, #tpu.memory_space<vmem>>, vector<1x1x16x16xf32>
    %11 = vector.shape_cast %10 : vector<1x1x16x16xf32> to vector<16x16xf32>
    %c0_21 = arith.constant 0 : index
    %c0_22 = arith.constant 0 : index
    %c0_23 = arith.constant 0 : index
    %c0_24 = arith.constant 0 : index
    %12 = vector.load %arg4[%c0_21, %c0_22, %c0_23, %c0_24] : memref<1x1x16x16xf32, #tpu.memory_space<vmem>>, vector<1x1x16x16xf32>
    %13 = vector.shape_cast %12 : vector<1x1x16x16xf32> to vector<16x16xf32>
    %14 = arith.mulf %1, %7 : vector<16x16xf32>
    %15 = arith.mulf %3, %9 : vector<16x16xf32>
    %16 = arith.addf %14, %15 : vector<16x16xf32>
    %17 = arith.mulf %5, %11 : vector<16x16xf32>
    %18 = arith.addf %16, %17 : vector<16x16xf32>
    %cst = arith.constant 5.000000e-01 : f32
    %19 = vector.broadcast %cst : f32 to vector<16x16xf32>
    %20 = arith.mulf %19, %13 : vector<16x16xf32>
    %21 = arith.addf %18, %20 : vector<16x16xf32>
    %22 = arith.mulf %7, %7 : vector<16x16xf32>
    %23 = arith.mulf %9, %9 : vector<16x16xf32>
    %24 = arith.addf %22, %23 : vector<16x16xf32>
    %25 = arith.mulf %11, %11 : vector<16x16xf32>
    %26 = arith.addf %24, %25 : vector<16x16xf32>
    %cst_25 = arith.constant 5.000000e-01 : f32
    %27 = vector.broadcast %cst_25 : f32 to vector<16x16xf32>
    %28 = arith.addf %26, %27 : vector<16x16xf32>
    %29 = arith.divf %21, %28 : vector<16x16xf32>
    %c0_26 = arith.constant 0 : index
    %c0_27 = arith.constant 0 : index
    %c0_28 = arith.constant 0 : index
    %c0_29 = arith.constant 0 : index
    %30 = vector.load %arg5[%c0_26, %c0_27, %c0_28, %c0_29] : memref<1x1x16x16xf32, #tpu.memory_space<vmem>>, vector<1x1x16x16xf32>
    %31 = vector.shape_cast %30 : vector<1x1x16x16xf32> to vector<16x16xf32>
    %32 = vector.shape_cast %29 : vector<16x16xf32> to vector<1x1x16x16xf32>
    tpu.vector_store %arg5[%c0_26, %c0_27, %c0_28, %c0_29], %32 {strides = array<i32>} : memref<1x1x16x16xf32, #tpu.memory_space<vmem>>, vector<1x1x16x16xf32>,
    return
  }
  func.func @transform_0(%arg0: i32, %arg1: i32) -> (i32, i32, i32, i32) {
    %c0_i32 = arith.constant 0 : i32
    %c0_i32_0 = arith.constant 0 : i32
    %c0_i32_1 = arith.constant 0 : i32
    return %arg0, %c0_i32, %arg1, %c0_i32_0 : i32, i32, i32, i32
  }
  func.func @transform_1(%arg0: i32, %arg1: i32) -> (i32, i32, i32, i32) {
    %c0_i32 = arith.constant 0 : i32
    %c0_i32_0 = arith.constant 0 : i32
    %c0_i32_1 = arith.constant 0 : i32
    return %arg0, %c0_i32, %arg1, %c0_i32_0 : i32, i32, i32, i32
  }
  func.func @transform_2(%arg0: i32, %arg1: i32) -> (i32, i32, i32, i32) {
    %c0_i32 = arith.constant 0 : i32
    %c0_i32_0 = arith.constant 0 : i32
    %c0_i32_1 = arith.constant 0 : i32
    return %arg0, %c0_i32, %arg1, %c0_i32_0 : i32, i32, i32, i32
  }
  func.func @transform_3(%arg0: i32, %arg1: i32) -> (i32, i32, i32, i32) {
    %c0_i32 = arith.constant 0 : i32
    %c0_i32_0 = arith.constant 0 : i32
    %c0_i32_1 = arith.constant 0 : i32
    return %arg0, %c0_i32, %arg1, %c0_i32_0 : i32, i32, i32, i32
  }
}

</mosaic_0001>

<llo_original>
// kernel: tpu_custom_call.1
$region0: #{tpu_custom_call.1}
  #allocation0 [shape = 'u32[]', space=smem, size = 0x4, offset = 0x4, fixed_abs, tag = 'smem constant byte address 0x4 - core index']
  #allocation1 [shape = 'u32[144,128]{1,0:T(1,128)}', space=vmem, size = 0x12000, scoped, tag = 'internal scratch']
  %s0 = inlined_call_operand.hbm [shape: f32[2,3,16,16], index: 0, kind: input, shape index: {}]
  %s1 = inlined_call_operand.hbm [shape: f32[2,3,16,16], index: 1, kind: input, shape index: {}]
  %s2 = inlined_call_operand.hbm [shape: f32[2,1,16,16], index: 2, kind: input, shape index: {}]
  %s3 = inlined_call_operand.hbm [shape: f32[2,1,16,16], index: 3, kind: output, shape index: {}]
  %s4 = sld [smem:[#allocation0]]
  $region57: #{tpu_custom_call.1} parent=0
    _
  %s6 = ssub.s32 1, %s4
  %s7 = scalar_select 0, %s6, %s4
  $region1: #{tpu_custom_call.1} parent=0
    #allocation2 [shape = 'u8[49152]{0}', space=vmem, size = 0xc000, scoped, tag = 'input window, operand 0']
    #allocation3 [shape = 's32[2]{0}', space=sflag, size = 0x8, scoped, tag = 'scoped memory for tpu_custom_call.1']
    #allocation4 [shape = 's32[2]{0}', space=sflag, size = 0x8, scoped, tag = 'scoped memory for tpu_custom_call.1']
    #allocation5 [shape = 'u8[49152]{0}', space=vmem, size = 0xc000, scoped, tag = 'input window, operand 1']
    #allocation6 [shape = 's32[2]{0}', space=sflag, size = 0x8, scoped, tag = 'scoped memory for tpu_custom_call.1']
    #allocation7 [shape = 'u8[16384]{0}', space=vmem, size = 0x4000, scoped, tag = 'input window, operand 2']
    #allocation8 [shape = 'u8[16384]{0}', space=vmem, size = 0x4000, scoped, tag = 'output window, operand 0']
    %8 = vsyncpa [#allocation3], 0
    %s9 = scalar_lea.sflag [#allocation3], 1
    %10 = vsyncpa %s9, 0
    %11 = vsyncpa [#allocation6], 0
    %s12 = scalar_lea.sflag [#allocation6], 1
    %13 = vsyncpa %s12, 0
    %14 = vsyncpa [#allocation4], 0
    %s15 = scalar_lea.sflag [#allocation4], 1
    %16 = vsyncpa %s15, 0
    loop: start=0, step=1, limit=4
    $region2: #{tpu_custom_call.1} parent=1 // loop_pre_header
      _
    $region3: #{tpu_custom_call.1} parent=1 // loop_header
      %s18 = sphi 0, %s22
      %p19 = scmp.ge.s32.totalorder %s18, 4
      %s25 = sphi 0, %s37
      %s26 = sphi 0, %s33
      %s27 = sphi 0, %s25
      %s28 = sphi 0, %s26
      %s29 = sphi 0, %s27
      %s30 = sphi 0, %s28
      %s42 = sphi 0, %s44
      %s45 = sphi 0, %s42
      %s46 = sphi 0, %s45
      %s62 = sphi 0, %s46
      %s70 = sphi 0, %s72
      %s73 = sphi 0, %s70
      %s74 = sphi 0, %s73
      %s90 = sphi 0, %s74
      %s98 = sphi 0, %s100
      %s101 = sphi 0, %s98
      %s102 = sphi 0, %s101
      %s118 = sphi 0, %s102
      %s126 = sphi 0, %s128
      %s129 = sphi 0, %s126
      %s130 = sphi 0, %s129
      %s146 = sphi 0, %s130
    $region4: #{tpu_custom_call.1} parent=1 // loop_header_branch
      %21 = sbr.rel (%p19) target = $region8
    $region5: #{tpu_custom_call.1} parent=1 // loop_body
      %s23 = ssub.s32 %s18, 1
      %s24 = ssub.s32 %s18, 2
      %s31 = sadd.s32 1, %s26
      %p32 = scmp.ge.s32.totalorder %s31, 1
      %s33 = scalar_select %p32, 0, %s31
      %s34 = sadd.s32 1, %s25
      %s35 = scalar_select %p32, %s34, %s25
      %p36 = scmp.ge.s32.totalorder %s35, 2
      %s37 = scalar_select %p36, 0, %s35
      %s38 = ssub.s32 %s25, %s37
      %s39 = ssub.s32 %s26, %s33
      %s40 = sor.u32 %s38, %s39
      %p41 = scmp.eq.s32.totalorder %s40, 0
      %s43 = sadd.s32 %s42, 1
      %s44 = scalar_select %p41, %s42, %s43
      %p47 = pneg %p41
      %p48 = scmp.eq.s32.totalorder %s18, 1
      %p49 = por %p47, %p48
      %p50 = scmp.ne.s32.totalorder %s42, %s45
      %p51 = scmp.eq.s32.totalorder %s18, 0
      %p52 = por %p50, %p51
      %p53 = scmp.ne.s32.totalorder %s42, %s45
      %p54 = scmp.eq.s32.totalorder %s23, 1
      %p55 = por %p53, %p54
      %p56 = scmp.ne.s32.totalorder %s45, %s46
      %p57 = scmp.eq.s32.totalorder %s23, 0
      %p58 = por %p56, %p57
      %p59 = scmp.ne.s32.totalorder %s45, %s46
      %p60 = scmp.eq.s32.totalorder %s24, 1
      %p61 = por %p59, %p60
      %p63 = scmp.ne.s32.totalorder %s46, %s62
      %p64 = scmp.eq.s32.totalorder %s24, 0
      %p65 = por %p63, %p64
      %s66 = ssub.s32 %s25, %s37
      %s67 = ssub.s32 %s26, %s33
      %s68 = sor.u32 %s66, %s67
      %p69 = scmp.eq.s32.totalorder %s68, 0
      %s71 = sadd.s32 %s70, 1
      %s72 = scalar_select %p69, %s70, %s71
      %p75 = pneg %p69
      %p76 = scmp.eq.s32.totalorder %s18, 1
      %p77 = por %p75, %p76
      %p78 = scmp.ne.s32.totalorder %s70, %s73
      %p79 = scmp.eq.s32.totalorder %s18, 0
      %p80 = por %p78, %p79
      %p81 = scmp.ne.s32.totalorder %s70, %s73
      %p82 = scmp.eq.s32.totalorder %s23, 1
      %p83 = por %p81, %p82
      %p84 = scmp.ne.s32.totalorder %s73, %s74
      %p85 = scmp.eq.s32.totalorder %s23, 0
      %p86 = por %p84, %p85
      %p87 = scmp.ne.s32.totalorder %s73, %s74
      %p88 = scmp.eq.s32.totalorder %s24, 1
      %p89 = por %p87, %p88
      %p91 = scmp.ne.s32.totalorder %s74, %s90
      %p92 = scmp.eq.s32.totalorder %s24, 0
      %p93 = por %p91, %p92
      %s94 = ssub.s32 %s25, %s37
      %s95 = ssub.s32 %s26, %s33
      %s96 = sor.u32 %s94, %s95
      %p97 = scmp.eq.s32.totalorder %s96, 0
      %s99 = sadd.s32 %s98, 1
      %s100 = scalar_select %p97, %s98, %s99
      %p103 = pneg %p97
      %p104 = scmp.eq.s32.totalorder %s18, 1
      %p105 = por %p103, %p104
      %p106 = scmp.ne.s32.totalorder %s98, %s101
      %p107 = scmp.eq.s32.totalorder %s18, 0
      %p108 = por %p106, %p107
      %p109 = scmp.ne.s32.totalorder %s98, %s101
      %p110 = scmp.eq.s32.totalorder %s23, 1
      %p111 = por %p109, %p110
      %p112 = scmp.ne.s32.totalorder %s101, %s102
      %p113 = scmp.eq.s32.totalorder %s23, 0
      %p114 = por %p112, %p113
      %p115 = scmp.ne.s32.totalorder %s101, %s102
      %p116 = scmp.eq.s32.totalorder %s24, 1
      %p117 = por %p115, %p116
      %p119 = scmp.ne.s32.totalorder %s102, %s118
      %p120 = scmp.eq.s32.totalorder %s24, 0
      %p121 = por %p119, %p120
      %s122 = ssub.s32 %s25, %s37
      %s123 = ssub.s32 %s26, %s33
      %s124 = sor.u32 %s122, %s123
      %p125 = scmp.eq.s32.totalorder %s124, 0
      %s127 = sadd.s32 %s126, 1
      %s128 = scalar_select %p125, %s126, %s127
      %p131 = pneg %p125
      %p132 = scmp.eq.s32.totalorder %s18, 1
      %p133 = por %p131, %p132
      %p134 = scmp.ne.s32.totalorder %s126, %s129
      %p135 = scmp.eq.s32.totalorder %s18, 0
      %p136 = por %p134, %p135
      %p137 = scmp.ne.s32.totalorder %s126, %s129
      %p138 = scmp.eq.s32.totalorder %s23, 1
      %p139 = por %p137, %p138
      %p140 = scmp.ne.s32.totalorder %s129, %s130
      %p141 = scmp.eq.s32.totalorder %s23, 0
      %p142 = por %p140, %p141
      %p143 = scmp.ne.s32.totalorder %s129, %s130
      %p144 = scmp.eq.s32.totalorder %s24, 1
      %p145 = por %p143, %p144
      %p147 = scmp.ne.s32.totalorder %s130, %s146
      %p148 = scmp.eq.s32.totalorder %s24, 0
      %p149 = por %p147, %p148
      %p150 = scmp.le.s32.totalorder 1, %s18
      %p151 = scmp.lt.s32.totalorder %s18, 3
      %p152 = pnand %p150, %p151
      %p153 = pneg %p152
      // Predicated region
      $region9: #{tpu_custom_call.1} parent=5 // pred_check
        _
      $region10: #{tpu_custom_call.1} parent=5 // pred_check_branch
        %155 = sbr.rel (%p152) target = $region12
      $region11: #{tpu_custom_call.1} parent=5 // pred_region
        %s156 = ssub.s32 %s18, 1
      $region12: #{tpu_custom_call.1} parent=5 // pred_fallthru
        _
      %p157 = scmp.lt.s32.totalorder %s18, 2
      // Predicated region
      $region13: #{tpu_custom_call.1} parent=5 // pred_check
        %p158 = pneg %p157
      $region14: #{tpu_custom_call.1} parent=5 // pred_check_branch
        %160 = sbr.rel (%p158) target = $region16
      $region15: #{tpu_custom_call.1} parent=5 // pred_region
        // Predicated region
        $region17: #{tpu_custom_call.1} parent=15 // pred_check
          %p161 = pneg %p52
        $region18: #{tpu_custom_call.1} parent=15 // pred_check_branch
          %163 = sbr.rel (%p161) target = $region20
        $region19: #{tpu_custom_call.1} parent=15 // pred_region
          %s164 = sand.u32 %s42, 1
          %s165 = scalar_lea.sflag [#allocation3], %s164
          %s166 = sand.u32 %s42, 1
          %s167 = smul.addr %s166, 48
          %s168 = scalar_lea.vmem [#allocation2], %s167
          %s169 = smul.u32 2, %s26
          %s171 = ssub.s32 768, 768
          %172 = vsyncadd %s165, %s171
          %s173 = smul.addr %s25, 6
          %s174 = sadd.s32 %s169, %s173
          %s175 = smul.addr %s174, 128
          %s176 = scalar_lea.hbm %s0, %s175
          %s177 = sshll.u32 %s168, 4
          %s178 = int_to_ptr.vmem [resolvable:$true] %s177
          %183 = dma.hbm_to_vmem [thread:$0]  %s176, 768, %s178, %s165, 128, 128, 8
        $region20: #{tpu_custom_call.1} parent=15 // pred_fallthru
          _
        // Predicated region
        $region21: #{tpu_custom_call.1} parent=15 // pred_check
          %p184 = pneg %p80
        $region22: #{tpu_custom_call.1} parent=15 // pred_check_branch
          %186 = sbr.rel (%p184) target = $region24
        $region23: #{tpu_custom_call.1} parent=15 // pred_region
          %s187 = sand.u32 %s18, 1
          %s188 = scalar_lea.sflag [#allocation6], %s187
          %s189 = sand.u32 %s70, 1
          %s190 = smul.addr %s189, 48
          %s191 = scalar_lea.vmem [#allocation5], %s190
          %s192 = smul.u32 2, %s26
          %s194 = ssub.s32 768, 768
          %195 = vsyncadd %s188, %s194
          %s196 = smul.addr %s25, 6
          %s197 = sadd.s32 %s192, %s196
          %s198 = smul.addr %s197, 128
          %s199 = scalar_lea.hbm %s1, %s198
          %s200 = sshll.u32 %s191, 4
          %s201 = int_to_ptr.vmem [resolvable:$true] %s200
          %206 = dma.hbm_to_vmem [thread:$0]  %s199, 768, %s201, %s188, 128, 128, 8
        $region24: #{tpu_custom_call.1} parent=15 // pred_fallthru
          _
        // Predicated region
        $region25: #{tpu_custom_call.1} parent=15 // pred_check
          %p207 = pneg %p108
        $region26: #{tpu_custom_call.1} parent=15 // pred_check_branch
          %209 = sbr.rel (%p207) target = $region28
        $region27: #{tpu_custom_call.1} parent=15 // pred_region
          %s210 = sand.u32 %s18, 1
          %s211 = scalar_lea.sflag [#allocation6], %s210
          %s212 = sand.u32 %s98, 1
          %s213 = smul.addr %s212, 16
          %s214 = scalar_lea.vmem [#allocation7], %s213
          %s215 = smul.u32 2, %s26
          %s217 = ssub.s32 256, 256
          %218 = vsyncadd %s211, %s217
          %s219 = smul.addr %s25, 2
          %s220 = sadd.s32 %s215, %s219
          %s221 = smul.addr %s220, 128
          %s222 = scalar_lea.hbm %s2, %s221
          %s223 = sshll.u32 %s214, 4
          %s224 = int_to_ptr.vmem [resolvable:$true] %s223
          %229 = dma.hbm_to_vmem [thread:$0]  %s222, 256, %s224, %s211, 128, 128, 8
        $region28: #{tpu_custom_call.1} parent=15 // pred_fallthru
          _
      $region16: #{tpu_custom_call.1} parent=5 // pred_fallthru
        _
      %p230 = scmp.le.s32.totalorder 1, %s18
      %p231 = scmp.lt.s32.totalorder %s18, 3
      %p232 = pnand %p230, %p231
      %p233 = pneg %p232
      // Predicated region
      $region29: #{tpu_custom_call.1} parent=5 // pred_check
        _
      $region30: #{tpu_custom_call.1} parent=5 // pred_check_branch
        %235 = sbr.rel (%p232) target = $region32
      $region31: #{tpu_custom_call.1} parent=5 // pred_region
        %s236 = ssub.s32 %s18, 1
        %s237 = sand.u32 %s45, 1
        %s238 = scalar_lea.sflag [#allocation3], %s237
        %s239 = sand.u32 %s45, 1
        %s240 = smul.addr %s239, 48
        %s241 = scalar_lea.vmem [#allocation2], %s240
        // Predicated region
        $region33: #{tpu_custom_call.1} parent=31 // pred_check
          %p242 = pneg %p58
        $region34: #{tpu_custom_call.1} parent=31 // pred_check_branch
          %244 = sbr.rel (%p242) target = $region36
        $region35: #{tpu_custom_call.1} parent=31 // pred_region
          %245 = dma.done %s238, 768
        $region36: #{tpu_custom_call.1} parent=31 // pred_fallthru
          _
        %s246 = sand.u32 %s23, 1
        %s247 = scalar_lea.sflag [#allocation6], %s246
        %s248 = sand.u32 %s73, 1
        %s249 = smul.addr %s248, 48
        %s250 = scalar_lea.vmem [#allocation5], %s249
        // Predicated region
        $region37: #{tpu_custom_call.1} parent=31 // pred_check
          %p251 = pneg %p86
        $region38: #{tpu_custom_call.1} parent=31 // pred_check_branch
          %253 = sbr.rel (%p251) target = $region40
        $region39: #{tpu_custom_call.1} parent=31 // pred_region
          %254 = dma.done %s247, 768
        $region40: #{tpu_custom_call.1} parent=31 // pred_fallthru
          _
        %s255 = sand.u32 %s23, 1
        %s256 = scalar_lea.sflag [#allocation6], %s255
        %s257 = sand.u32 %s101, 1
        %s258 = smul.addr %s257, 16
        %s259 = scalar_lea.vmem [#allocation7], %s258
        // Predicated region
        $region41: #{tpu_custom_call.1} parent=31 // pred_check
          %p260 = pneg %p114
        $region42: #{tpu_custom_call.1} parent=31 // pred_check_branch
          %262 = sbr.rel (%p260) target = $region44
        $region43: #{tpu_custom_call.1} parent=31 // pred_region
          %263 = dma.done %s256, 256
        $region44: #{tpu_custom_call.1} parent=31 // pred_fallthru
          _
        %s264 = sand.u32 %s45, 1
        %s265 = scalar_lea.sflag [#allocation3], %s264
        %s266 = sand.u32 %s45, 1
        %s267 = smul.addr %s266, 48
        %s268 = scalar_lea.vmem [#allocation2], %s267
        %p269 = pneg %p58
        %p270 = pneg %p55
        %s271 = sand.u32 %s23, 1
        %s272 = scalar_lea.sflag [#allocation6], %s271
        %s273 = sand.u32 %s73, 1
        %s274 = smul.addr %s273, 48
        %s275 = scalar_lea.vmem [#allocation5], %s274
        %p276 = pneg %p86
        %p277 = pneg %p83
        %s278 = sand.u32 %s23, 1
        %s279 = scalar_lea.sflag [#allocation6], %s278
        %s280 = sand.u32 %s101, 1
        %s281 = smul.addr %s280, 16
        %s282 = scalar_lea.vmem [#allocation7], %s281
        %p283 = pneg %p114
        %p284 = pneg %p111
        %p285 = pneg %p142
        %p286 = pneg %p139
        %s287 = sand.u32 %s129, 1
        %s288 = scalar_lea.sflag [#allocation4], %s287
        %s289 = sand.u32 %s129, 1
        %s290 = smul.addr %s289, 16
        %s291 = scalar_lea.vmem [#allocation8], %s290
        %s292 = smul.u32 2, %s28
        %s293 = smul.u32 2, %s28
        %s294 = smul.u32 2, %s28
        %s295 = smul.u32 2, %s28
        %v296 = vld [vmem:[%s241] sm:$0xff]
        %v297 = vld [vmem:[%s241 + $0x8] sm:$0xff]
        %s298 = scalar_lea.vmem %s241, 16 [#allocation2]
        %v299 = vld [vmem:[%s298] sm:$0xff]
        %v300 = vld [vmem:[%s298 + $0x8] sm:$0xff]
        %s301 = scalar_lea.vmem %s241, 32 [#allocation2]
        %v302 = vld [vmem:[%s301] sm:$0xff]
        %v303 = vld [vmem:[%s301 + $0x8] sm:$0xff]
        %v304 = vld [vmem:[%s250] sm:$0xff]
        %v305 = vld [vmem:[%s250 + $0x8] sm:$0xff]
        %s306 = scalar_lea.vmem %s250, 16 [#allocation5]
        %v307 = vld [vmem:[%s306] sm:$0xff]
        %v308 = vld [vmem:[%s306 + $0x8] sm:$0xff]
        %s309 = scalar_lea.vmem %s250, 32 [#allocation5]
        %v310 = vld [vmem:[%s309] sm:$0xff]
        %v311 = vld [vmem:[%s309 + $0x8] sm:$0xff]
        %v312 = vld [vmem:[%s259] sm:$0xff]
        %v313 = vld [vmem:[%s259 + $0x8] sm:$0xff]
        %v314 = vmul.f32 %v296, %v304
        %v315 = vmul.f32 %v297, %v305
        %v316 = vmul.f32 %v299, %v307
        %v317 = vmul.f32 %v300, %v308
        %v318 = vadd.f32 %v314, %v316
        %v319 = vadd.f32 %v315, %v317
        %v320 = vmul.f32 %v302, %v310
        %v321 = vmul.f32 %v303, %v311
        %v322 = vadd.f32 %v318, %v320
        %v323 = vadd.f32 %v319, %v321
        %v324 = vmul.f32 %v312, 0.5
        %v325 = vmul.f32 %v313, 0.5
        %v326 = vadd.f32 %v322, %v324
        %v327 = vadd.f32 %v323, %v325
        %v328 = vmul.f32 %v304, %v304
        %v329 = vmul.f32 %v305, %v305
        %v330 = vmul.f32 %v307, %v307
        %v331 = vmul.f32 %v308, %v308
        %v332 = vadd.f32 %v328, %v330
        %v333 = vadd.f32 %v329, %v331
        %v334 = vmul.f32 %v310, %v310
        %v335 = vmul.f32 %v311, %v311
        %v336 = vadd.f32 %v332, %v334
        %v337 = vadd.f32 %v333, %v335
        %v338 = vadd.f32 %v336, 0.5
        %v339 = vadd.f32 %v337, 0.5
        %v340 = vrcp.pop %v338
        %v341 = vmul.f32 %v326, %v340
        %v342 = vrcp.pop %v339
        %v343 = vmul.f32 %v327, %v342
        %vm344 = vcmask 130048
        %345 = vst.msk [vmem:[%s291] sm:$0xff] %vm344, %v341
        %346 = vst.msk [vmem:[%s291 + $0x8] sm:$0xff] %vm344, %v343
        %s347 = sand.u32 %s129, 1
        %s348 = scalar_lea.sflag [#allocation4], %s347
        %s349 = sand.u32 %s129, 1
        %s350 = smul.addr %s349, 16
        %s351 = scalar_lea.vmem [#allocation8], %s350
        // Predicated region
        $region45: #{tpu_custom_call.1} parent=31 // pred_check
          %p352 = pneg %p139
        $region46: #{tpu_custom_call.1} parent=31 // pred_check_branch
          %354 = sbr.rel (%p352) target = $region48
        $region47: #{tpu_custom_call.1} parent=31 // pred_region
          %s355 = smul.u32 2, %s28
          %s357 = ssub.s32 256, 256
          %358 = vsyncadd %s348, %s357
          %s359 = smul.addr %s27, 2
          %s360 = sadd.s32 %s355, %s359
          %s361 = smul.addr %s360, 128
          %s362 = scalar_lea.hbm %s3, %s361
          %s363 = sshll.u32 %s351, 4
          %s364 = int_to_ptr.vmem [resolvable:$true] %s363
          %369 = dma.vmem_to_hbm [thread:$0]  %s364, 256, %s362, %s348, 128, 128, 8
        $region48: #{tpu_custom_call.1} parent=31 // pred_fallthru
          _
      $region32: #{tpu_custom_call.1} parent=5 // pred_fallthru
        _
      %p370 = scmp.le.s32.totalorder 2, %s18
      // Predicated region
      $region49: #{tpu_custom_call.1} parent=5 // pred_check
        %p371 = pneg %p370
      $region50: #{tpu_custom_call.1} parent=5 // pred_check_branch
        %373 = sbr.rel (%p371) target = $region52
      $region51: #{tpu_custom_call.1} parent=5 // pred_region
        %s374 = ssub.s32 %s18, 2
        // Predicated region
        $region53: #{tpu_custom_call.1} parent=51 // pred_check
          %p375 = pneg %p145
        $region54: #{tpu_custom_call.1} parent=51 // pred_check_branch
          %377 = sbr.rel (%p375) target = $region56
        $region55: #{tpu_custom_call.1} parent=51 // pred_region
          %s378 = sand.u32 %s130, 1
          %s379 = scalar_lea.sflag [#allocation4], %s378
          %s380 = sand.u32 %s130, 1
          %s381 = smul.addr %s380, 16
          %s382 = scalar_lea.vmem [#allocation8], %s381
          %383 = dma.done %s379, 256
        $region56: #{tpu_custom_call.1} parent=51 // pred_fallthru
          _
      $region52: #{tpu_custom_call.1} parent=5 // pred_fallthru
        _
    $region6: #{tpu_custom_call.1} parent=1 // loop_footer
      %s22 = sadd.s32 1, %s18
    $region7: #{tpu_custom_call.1} parent=1 // loop_footer_branch
      %17 = sbr.rel target = $region3
    $region8: #{tpu_custom_call.1} parent=1 // loop_exit
      _
    %384 = vsyncpa [#allocation3], 1
    %s385 = scalar_lea.sflag [#allocation3], 1
    %386 = vsyncpa %s385, 1
    %387 = vsyncpa [#allocation6], 1
    %s388 = scalar_lea.sflag [#allocation6], 1
    %389 = vsyncpa %s388, 1
    %390 = vsyncpa [#allocation4], 1
    %s391 = scalar_lea.sflag [#allocation4], 1
    %392 = vsyncpa %s391, 1

</llo_original>
